<compile_context>
chip_gen: v7x
topology: tpu7x:2x2x1
jax: 0.10.0
libtpu: 0.0.40
codegen_flags: <defaults>
</compile_context>

<pallas_src>
import functools

import jax
import jax.numpy as jnp
from jax.experimental import pallas as pl
from jax.experimental.pallas import tpu as pltpu

NUM_CLASS = 4                 # num_class
NUM_ORGAN = NUM_CLASS - 1     # num_organ
LANE = 128
SUB = 8


def _dice_loss_kernel(pred_ref, tgt_ref, out_ref, acc_pg, acc_p, acc_g, *,
                      num_class):
    """Grid: (B, S // TILE_S).
    pred_ref: (1, C, TILE_S, 128) caller dtype; tgt_ref: (1, TILE_S, 128) i32;
    out_ref:  (1, 8, 128) f32 per-batch dice (lane-dense, written at last step);
    acc_*:    (C-1, 8, 128) f32 VMEM accumulators (persist across spatial steps).
    """
    s = pl.program_id(1)

    @pl.when(s == 0)
    def _():
        acc_pg[...] = jnp.zeros_like(acc_pg)
        acc_p[...] = jnp.zeros_like(acc_p)
        acc_g[...] = jnp.zeros_like(acc_g)

    tgt = tgt_ref[0]                      # (TILE_S, 128) int32 labels
    ts = tgt.shape[0]

    # Skip background class 0, exactly like get_dice (range(1, num_class)).
    for c in range(1, num_class):
        P = pred_ref[0, c].astype(jnp.float32)      # (TILE_S, 128), f32 accum
        m = tgt == c
        pg = jnp.where(m, P, 0.0)                    # P * G without one-hot mul
        g = jnp.where(m, 1.0, 0.0)                   # G
        # (TILE_S,128) -> (8,128): layout-preserving reshape + vreg-wise adds
        # on the VPU; the expensive cross-lane/sublane reduce is deferred to
        # the finalize step (once per class per batch).
        acc_pg[c - 1] = acc_pg[c - 1] + pg.reshape(ts // SUB, SUB, LANE).sum(axis=0)
        acc_p[c - 1] = acc_p[c - 1] + P.reshape(ts // SUB, SUB, LANE).sum(axis=0)
        acc_g[c - 1] = acc_g[c - 1] + g.reshape(ts // SUB, SUB, LANE).sum(axis=0)

    @pl.when(s == pl.num_programs(1) - 1)
    def _():
        dice = jnp.float32(0.0)
        for c in range(1, num_class):
            mulPG = jnp.sum(acc_pg[c - 1])
            sumP = jnp.sum(acc_p[c - 1])
            sumG = jnp.sum(acc_g[c - 1])
            # mul_PG = sumG - mulPG ; mulP_G = sumP - mulPG
            # => mulPG + 0.8*mul_PG + 0.2*mulP_G == 0.8*sumG + 0.2*sumP
            dice = dice + (mulPG + 1.0) / (0.8 * sumG + 0.2 * sumP + 1.0)
        out_ref[...] = jnp.full(out_ref.shape, dice, jnp.float32)


def _pick_tile_s(S, C, itemsize, block_budget_bytes=4 << 20):
    """Largest multiple-of-8 divisor of S keeping the pred block <= ~budget.

    With the default 4 MiB budget the total VMEM footprint (double-buffered
    pred + tgt blocks + tiny accumulators/output) stays well under every
    generation's scoped-VMEM default (16 MiB on v5e), so no vmem_limit raise
    is needed.
    """
    t = max(SUB, block_budget_bytes // (C * LANE * itemsize))
    t = min(S, t)
    t -= t % SUB
    t = max(t, SUB)
    while S % t != 0:          # S is a multiple of 8, so this terminates at >= 8
        t -= SUB
    return t


def dice_loss(pred, target, *, tile_s=None):
    """pred: (B, C, D, H, W) float probabilities (f32/bf16);
    target: (B, D, H, W) integer class labels."""
    B, C, D, H, W = pred.shape
    assert target.shape == (B, D, H, W)
    assert C >= 2
    N = D * H * W
    ALIGN = SUB * LANE  # 1024: lane width 128 and sublane multiple of 8

    pred_f = pred.reshape(B, C, N)              # stream caller dtype (no upcast)
    tgt_f = target.reshape(B, N).astype(jnp.int32)
    if N % ALIGN != 0:
        # TODO(synk): this pad materializes an HBM copy of pred; for unaligned
        # volumes it could be replaced by in-kernel tail masking with a
        # scalar-prefetch valid-count.  Padding pred with 0 and target with -1
        # contributes exactly 0 to every partial sum, so results are unchanged.
        Np = ((N + ALIGN - 1) // ALIGN) * ALIGN
        pred_f = jnp.pad(pred_f, ((0, 0), (0, 0), (0, Np - N)))
        tgt_f = jnp.pad(tgt_f, ((0, 0), (0, Np - N)), constant_values=-1)
        N = Np
    S = N // LANE

    if tile_s is None:
        tile_s = _pick_tile_s(S, C, pred_f.dtype.itemsize)
    assert S % tile_s == 0 and tile_s % SUB == 0

    pred_r = pred_f.reshape(B, C, S, LANE)
    tgt_r = tgt_f.reshape(B, S, LANE)

    out = pl.pallas_call(
        functools.partial(_dice_loss_kernel, num_class=C),
        out_shape=jax.ShapeDtypeStruct((B, SUB, LANE), jnp.float32),
        grid=(B, S // tile_s),
        in_specs=[
            pl.BlockSpec((1, C, tile_s, LANE), lambda b, s: (b, 0, s, 0)),
            pl.BlockSpec((1, tile_s, LANE), lambda b, s: (b, s, 0)),
        ],
        out_specs=pl.BlockSpec((1, SUB, LANE), lambda b, s: (b, 0, 0)),
        scratch_shapes=[
            pltpu.VMEM((C - 1, SUB, LANE), jnp.float32),   # sum(P*G) per class
            pltpu.VMEM((C - 1, SUB, LANE), jnp.float32),   # sum(P)   per class
            pltpu.VMEM((C - 1, SUB, LANE), jnp.float32),   # sum(G)   per class
        ],
        compiler_params=pltpu.CompilerParams(
            # Batch axis shards across TensorCores (v7x megacore); spatial axis
            # is a reduction into the resident per-core accumulators/output.
            dimension_semantics=("parallel", "arbitrary")),
    )(pred_r, tgt_r)

    # loss = 1 - mean over batch of per-batch dice sums (done outside kernel).
    return 1.0 - jnp.mean(out[:, 0, 0])


def dice_loss_ref(pred, target, num_class):
    """Pure-JAX reference mirroring the PyTorch module."""
    B = pred.shape[0]
    p = pred.astype(jnp.float32)
    onehot = jax.nn.one_hot(target, num_class, axis=1, dtype=jnp.float32)
    dice = jnp.zeros((B,), jnp.float32)
    for c in range(1, num_class):
        P = p[:, c]
        G = onehot[:, c]
        mulPG = (P * G).sum(axis=(1, 2, 3))
        mul_PG = ((1.0 - P) * G).sum(axis=(1, 2, 3))
        mulP_G = (P * (1.0 - G)).sum(axis=(1, 2, 3))
        dice = dice + (mulPG + 1.0) / (mulPG + 0.8 * mul_PG + 0.2 * mulP_G + 1.0)
    return 1.0 - dice.mean()


if __name__ == "__main__":
    key = jax.random.PRNGKey(0)
    k1, k2 = jax.random.split(key)

    B, C, D, H, W = 2, NUM_CLASS, 8, 16, 16
    # pred behaves like class probabilities over the channel axis
    pred = jax.nn.softmax(jax.random.normal(k1, (B, C, D, H, W), jnp.float32), axis=1)
    target = jax.random.randint(k2, (B, D, H, W), 0, NUM_CLASS, dtype=jnp.int32)

    ref = dice_loss_ref(pred, target, C)

    # Default tile pick (single spatial tile at this small size).
    loss = jax.block_until_ready(dice_loss(pred, target))
    assert jnp.allclose(loss, ref, rtol=1e-4, atol=2e-5), (loss, ref)

    # Forced small spatial tile: exercises accumulation across the "arbitrary"
    # spatial grid axis and the init/finalize pl.when paths.
    loss_tiled = jax.block_until_ready(dice_loss(pred, target, tile_s=8))
    assert jnp.allclose(loss_tiled, ref, rtol=1e-4, atol=2e-5), (loss_tiled, ref)

    # bf16 streaming path (halves HBM traffic; accumulation stays f32 in-kernel).
    loss_bf16 = jax.block_until_ready(dice_loss(pred.astype(jnp.bfloat16), target))
    assert jnp.allclose(loss_bf16, ref, rtol=3e-2, atol=3e-2), (loss_bf16, ref)

    print("KERNEL_OK")
</pallas_src>

<mosaic_0001>
module attributes {stable_mosaic.version = 11 : i64} {
  func.func @_dice_loss_kernel(%arg0: i32, %arg1: i32, %arg2: memref<1x4x16x128xf32, #tpu.memory_space<vmem>>, %arg3: memref<1x16x128xi32, #tpu.memory_space<vmem>>, %arg4: memref<1x8x128xf32, #tpu.memory_space<vmem>>, %arg5: memref<3x8x128xf32, #tpu.memory_space<vmem>>, %arg6: memref<3x8x128xf32, #tpu.memory_space<vmem>>, %arg7: memref<3x8x128xf32, #tpu.memory_space<vmem>>) attributes {dimension_semantics = [#tpu.dimension_semantics<parallel>, #tpu.dimension_semantics<arbitrary>], iteration_bounds = array<i64: 2, 1>, scalar_prefetch = 0 : i64, scratch_operands = 3 : i64, tpu.core_type = #tpu.core_type<tc>, window_params = [{transform_indices = @transform_0, window_bounds = array<i64: 1, 4, 16, 128>}, {transform_indices = @transform_1, window_bounds = array<i64: 1, 16, 128>}, {transform_indices = @transform_2, window_bounds = array<i64: 1, 8, 128>}]} {
    %c0_i32 = arith.constant 0 : i32
    %0 = arith.cmpi eq, %arg1, %c0_i32 : i32
    %1 = arith.extui %0 : i1 to i32
    %c0_i32_0 = arith.constant 0 : i32
    %2 = arith.cmpi ne, %1, %c0_i32_0 : i32
    scf.if %2 {
      %cst_85 = arith.constant 0.000000e+00 : f32
      %107 = vector.broadcast %cst_85 : f32 to vector<3x8x128xf32>
      %c0_86 = arith.constant 0 : index
      %c0_87 = arith.constant 0 : index
      %c0_88 = arith.constant 0 : index
      %108 = vector.load %arg5[%c0_86, %c0_87, %c0_88] : memref<3x8x128xf32, #tpu.memory_space<vmem>>, vector<3x8x128xf32>
      tpu.vector_store %arg5[%c0_86, %c0_87, %c0_88], %107 {strides = array<i32>} : memref<3x8x128xf32, #tpu.memory_space<vmem>>, vector<3x8x128xf32>,
      %cst_89 = arith.constant 0.000000e+00 : f32
      %109 = vector.broadcast %cst_89 : f32 to vector<3x8x128xf32>
      %c0_90 = arith.constant 0 : index
      %c0_91 = arith.constant 0 : index
      %c0_92 = arith.constant 0 : index
      %110 = vector.load %arg6[%c0_90, %c0_91, %c0_92] : memref<3x8x128xf32, #tpu.memory_space<vmem>>, vector<3x8x128xf32>
      tpu.vector_store %arg6[%c0_90, %c0_91, %c0_92], %109 {strides = array<i32>} : memref<3x8x128xf32, #tpu.memory_space<vmem>>, vector<3x8x128xf32>,
      %cst_93 = arith.constant 0.000000e+00 : f32
      %111 = vector.broadcast %cst_93 : f32 to vector<3x8x128xf32>
      %c0_94 = arith.constant 0 : index
      %c0_95 = arith.constant 0 : index
      %c0_96 = arith.constant 0 : index
      %112 = vector.load %arg7[%c0_94, %c0_95, %c0_96] : memref<3x8x128xf32, #tpu.memory_space<vmem>>, vector<3x8x128xf32>
      tpu.vector_store %arg7[%c0_94, %c0_95, %c0_96], %111 {strides = array<i32>} : memref<3x8x128xf32, #tpu.memory_space<vmem>>, vector<3x8x128xf32>,
    } else {
    }
    %c0 = arith.constant 0 : index
    %c0_1 = arith.constant 0 : index
    %c0_2 = arith.constant 0 : index
    %3 = vector.load %arg3[%c0, %c0_1, %c0_2] : memref<1x16x128xi32, #tpu.memory_space<vmem>>, vector<1x16x128xi32>
    %4 = vector.shape_cast %3 : vector<1x16x128xi32> to vector<16x128xi32>
    %c0_3 = arith.constant 0 : index
    %c1 = arith.constant 1 : index
    %c0_4 = arith.constant 0 : index
    %c0_5 = arith.constant 0 : index
    %5 = vector.load %arg2[%c0_3, %c1, %c0_4, %c0_5] : memref<1x4x16x128xf32, #tpu.memory_space<vmem>>, vector<1x1x16x128xf32>
    %6 = vector.shape_cast %5 : vector<1x1x16x128xf32> to vector<16x128xf32>
    %c1_i32 = arith.constant 1 : i32
    %7 = vector.broadcast %c1_i32 : i32 to vector<16x128xi32>
    %8 = arith.cmpi eq, %4, %7 : vector<16x128xi32>
    %cst = arith.constant 0.000000e+00 : f32
    %9 = vector.broadcast %cst : f32 to vector<16x128xf32>
    %10 = arith.select %8, %6, %9 : vector<16x128xi1>, vector<16x128xf32>
    %cst_6 = arith.constant 1.000000e+00 : f32
    %cst_7 = arith.constant 0.000000e+00 : f32
    %11 = vector.broadcast %cst_6 : f32 to vector<16x128xf32>
    %12 = vector.broadcast %cst_7 : f32 to vector<16x128xf32>
    %13 = arith.select %8, %11, %12 : vector<16x128xi1>, vector<16x128xf32>
    %c0_8 = arith.constant 0 : index
    %c0_9 = arith.constant 0 : index
    %c0_10 = arith.constant 0 : index
    %14 = vector.load %arg5[%c0_8, %c0_9, %c0_10] : memref<3x8x128xf32, #tpu.memory_space<vmem>>, vector<1x8x128xf32>
    %15 = vector.shape_cast %14 : vector<1x8x128xf32> to vector<8x128xf32>
    %16 = vector.shape_cast %10 : vector<16x128xf32> to vector<2x8x128xf32>
    %cst_11 = arith.constant dense<0.000000e+00> : vector<8x128xf32>
    %17 = vector.multi_reduction <add>, %16, %cst_11 [0] : vector<2x8x128xf32> to vector<8x128xf32>
    %18 = arith.addf %15, %17 : vector<8x128xf32>
    %c0_12 = arith.constant 0 : index
    %c0_13 = arith.constant 0 : index
    %c0_14 = arith.constant 0 : index
    %19 = vector.load %arg5[%c0_12, %c0_13, %c0_14] : memref<3x8x128xf32, #tpu.memory_space<vmem>>, vector<1x8x128xf32>
    %20 = vector.shape_cast %19 : vector<1x8x128xf32> to vector<8x128xf32>
    %21 = vector.shape_cast %18 : vector<8x128xf32> to vector<1x8x128xf32>
    tpu.vector_store %arg5[%c0_12, %c0_13, %c0_14], %21 {strides = array<i32>} : memref<3x8x128xf32, #tpu.memory_space<vmem>>, vector<1x8x128xf32>,
    %c0_15 = arith.constant 0 : index
    %c0_16 = arith.constant 0 : index
    %c0_17 = arith.constant 0 : index
    %22 = vector.load %arg6[%c0_15, %c0_16, %c0_17] : memref<3x8x128xf32, #tpu.memory_space<vmem>>, vector<1x8x128xf32>
    %23 = vector.shape_cast %22 : vector<1x8x128xf32> to vector<8x128xf32>
    %24 = vector.shape_cast %6 : vector<16x128xf32> to vector<2x8x128xf32>
    %cst_18 = arith.constant dense<0.000000e+00> : vector<8x128xf32>
    %25 = vector.multi_reduction <add>, %24, %cst_18 [0] : vector<2x8x128xf32> to vector<8x128xf32>
    %26 = arith.addf %23, %25 : vector<8x128xf32>
    %c0_19 = arith.constant 0 : index
    %c0_20 = arith.constant 0 : index
    %c0_21 = arith.constant 0 : index
    %27 = vector.load %arg6[%c0_19, %c0_20, %c0_21] : memref<3x8x128xf32, #tpu.memory_space<vmem>>, vector<1x8x128xf32>
    %28 = vector.shape_cast %27 : vector<1x8x128xf32> to vector<8x128xf32>
    %29 = vector.shape_cast %26 : vector<8x128xf32> to vector<1x8x128xf32>
    tpu.vector_store %arg6[%c0_19, %c0_20, %c0_21], %29 {strides = array<i32>} : memref<3x8x128xf32, #tpu.memory_space<vmem>>, vector<1x8x128xf32>,
    %c0_22 = arith.constant 0 : index
    %c0_23 = arith.constant 0 : index
    %c0_24 = arith.constant 0 : index
    %30 = vector.load %arg7[%c0_22, %c0_23, %c0_24] : memref<3x8x128xf32, #tpu.memory_space<vmem>>, vector<1x8x128xf32>
    %31 = vector.shape_cast %30 : vector<1x8x128xf32> to vector<8x128xf32>
    %32 = vector.shape_cast %13 : vector<16x128xf32> to vector<2x8x128xf32>
    %cst_25 = arith.constant dense<0.000000e+00> : vector<8x128xf32>
    %33 = vector.multi_reduction <add>, %32, %cst_25 [0] : vector<2x8x128xf32> to vector<8x128xf32>
    %34 = arith.addf %31, %33 : vector<8x128xf32>
    %c0_26 = arith.constant 0 : index
    %c0_27 = arith.constant 0 : index
    %c0_28 = arith.constant 0 : index
    %35 = vector.load %arg7[%c0_26, %c0_27, %c0_28] : memref<3x8x128xf32, #tpu.memory_space<vmem>>, vector<1x8x128xf32>
    %36 = vector.shape_cast %35 : vector<1x8x128xf32> to vector<8x128xf32>
    %37 = vector.shape_cast %34 : vector<8x128xf32> to vector<1x8x128xf32>
    tpu.vector_store %arg7[%c0_26, %c0_27, %c0_28], %37 {strides = array<i32>} : memref<3x8x128xf32, #tpu.memory_space<vmem>>, vector<1x8x128xf32>,
    %c0_29 = arith.constant 0 : index
    %c2 = arith.constant 2 : index
    %c0_30 = arith.constant 0 : index
    %c0_31 = arith.constant 0 : index
    %38 = vector.load %arg2[%c0_29, %c2, %c0_30, %c0_31] : memref<1x4x16x128xf32, #tpu.memory_space<vmem>>, vector<1x1x16x128xf32>
    %39 = vector.shape_cast %38 : vector<1x1x16x128xf32> to vector<16x128xf32>
    %c2_i32 = arith.constant 2 : i32
    %40 = vector.broadcast %c2_i32 : i32 to vector<16x128xi32>
    %41 = arith.cmpi eq, %4, %40 : vector<16x128xi32>
    %cst_32 = arith.constant 0.000000e+00 : f32
    %42 = vector.broadcast %cst_32 : f32 to vector<16x128xf32>
    %43 = arith.select %41, %39, %42 : vector<16x128xi1>, vector<16x128xf32>
    %cst_33 = arith.constant 1.000000e+00 : f32
    %cst_34 = arith.constant 0.000000e+00 : f32
    %44 = vector.broadcast %cst_33 : f32 to vector<16x128xf32>
    %45 = vector.broadcast %cst_34 : f32 to vector<16x128xf32>
    %46 = arith.select %41, %44, %45 : vector<16x128xi1>, vector<16x128xf32>
    %c1_35 = arith.constant 1 : index
    %c0_36 = arith.constant 0 : index
    %c0_37 = arith.constant 0 : index
    %47 = vector.load %arg5[%c1_35, %c0_36, %c0_37] : memref<3x8x128xf32, #tpu.memory_space<vmem>>, vector<1x8x128xf32>
    %48 = vector.shape_cast %47 : vector<1x8x128xf32> to vector<8x128xf32>
    %49 = vector.shape_cast %43 : vector<16x128xf32> to vector<2x8x128xf32>
    %cst_38 = arith.constant dense<0.000000e+00> : vector<8x128xf32>
    %50 = vector.multi_reduction <add>, %49, %cst_38 [0] : vector<2x8x128xf32> to vector<8x128xf32>
    %51 = arith.addf %48, %50 : vector<8x128xf32>
    %c1_39 = arith.constant 1 : index
    %c0_40 = arith.constant 0 : index
    %c0_41 = arith.constant 0 : index
    %52 = vector.load %arg5[%c1_39, %c0_40, %c0_41] : memref<3x8x128xf32, #tpu.memory_space<vmem>>, vector<1x8x128xf32>
    %53 = vector.shape_cast %52 : vector<1x8x128xf32> to vector<8x128xf32>
    %54 = vector.shape_cast %51 : vector<8x128xf32> to vector<1x8x128xf32>
    tpu.vector_store %arg5[%c1_39, %c0_40, %c0_41], %54 {strides = array<i32>} : memref<3x8x128xf32, #tpu.memory_space<vmem>>, vector<1x8x128xf32>,
    %c1_42 = arith.constant 1 : index
    %c0_43 = arith.constant 0 : index
    %c0_44 = arith.constant 0 : index
    %55 = vector.load %arg6[%c1_42, %c0_43, %c0_44] : memref<3x8x128xf32, #tpu.memory_space<vmem>>, vector<1x8x128xf32>
    %56 = vector.shape_cast %55 : vector<1x8x128xf32> to vector<8x128xf32>
    %57 = vector.shape_cast %39 : vector<16x128xf32> to vector<2x8x128xf32>
    %cst_45 = arith.constant dense<0.000000e+00> : vector<8x128xf32>
    %58 = vector.multi_reduction <add>, %57, %cst_45 [0] : vector<2x8x128xf32> to vector<8x128xf32>
    %59 = arith.addf %56, %58 : vector<8x128xf32>
    %c1_46 = arith.constant 1 : index
    %c0_47 = arith.constant 0 : index
    %c0_48 = arith.constant 0 : index
    %60 = vector.load %arg6[%c1_46, %c0_47, %c0_48] : memref<3x8x128xf32, #tpu.memory_space<vmem>>, vector<1x8x128xf32>
    %61 = vector.shape_cast %60 : vector<1x8x128xf32> to vector<8x128xf32>
    %62 = vector.shape_cast %59 : vector<8x128xf32> to vector<1x8x128xf32>
    tpu.vector_store %arg6[%c1_46, %c0_47, %c0_48], %62 {strides = array<i32>} : memref<3x8x128xf32, #tpu.memory_space<vmem>>, vector<1x8x128xf32>,
    %c1_49 = arith.constant 1 : index
    %c0_50 = arith.constant 0 : index
    %c0_51 = arith.constant 0 : index
    %63 = vector.load %arg7[%c1_49, %c0_50, %c0_51] : memref<3x8x128xf32, #tpu.memory_space<vmem>>, vector<1x8x128xf32>
    %64 = vector.shape_cast %63 : vector<1x8x128xf32> to vector<8x128xf32>
    %65 = vector.shape_cast %46 : vector<16x128xf32> to vector<2x8x128xf32>
    %cst_52 = arith.constant dense<0.000000e+00> : vector<8x128xf32>
    %66 = vector.multi_reduction <add>, %65, %cst_52 [0] : vector<2x8x128xf32> to vector<8x128xf32>
    %67 = arith.addf %64, %66 : vector<8x128xf32>
    %c1_53 = arith.constant 1 : index
    %c0_54 = arith.constant 0 : index
    %c0_55 = arith.constant 0 : index
    %68 = vector.load %arg7[%c1_53, %c0_54, %c0_55] : memref<3x8x128xf32, #tpu.memory_space<vmem>>, vector<1x8x128xf32>
    %69 = vector.shape_cast %68 : vector<1x8x128xf32> to vector<8x128xf32>
    %70 = vector.shape_cast %67 : vector<8x128xf32> to vector<1x8x128xf32>
    tpu.vector_store %arg7[%c1_53, %c0_54, %c0_55], %70 {strides = array<i32>} : memref<3x8x128xf32, #tpu.memory_space<vmem>>, vector<1x8x128xf32>,
    %c0_56 = arith.constant 0 : index
    %c3 = arith.constant 3 : index
    %c0_57 = arith.constant 0 : index
    %c0_58 = arith.constant 0 : index
    %71 = vector.load %arg2[%c0_56, %c3, %c0_57, %c0_58] : memref<1x4x16x128xf32, #tpu.memory_space<vmem>>, vector<1x1x16x128xf32>
    %72 = vector.shape_cast %71 : vector<1x1x16x128xf32> to vector<16x128xf32>
    %c3_i32 = arith.constant 3 : i32
    %73 = vector.broadcast %c3_i32 : i32 to vector<16x128xi32>
    %74 = arith.cmpi eq, %4, %73 : vector<16x128xi32>
    %cst_59 = arith.constant 0.000000e+00 : f32
    %75 = vector.broadcast %cst_59 : f32 to vector<16x128xf32>
    %76 = arith.select %74, %72, %75 : vector<16x128xi1>, vector<16x128xf32>
    %cst_60 = arith.constant 1.000000e+00 : f32
    %cst_61 = arith.constant 0.000000e+00 : f32
    %77 = vector.broadcast %cst_60 : f32 to vector<16x128xf32>
    %78 = vector.broadcast %cst_61 : f32 to vector<16x128xf32>
    %79 = arith.select %74, %77, %78 : vector<16x128xi1>, vector<16x128xf32>
    %c2_62 = arith.constant 2 : index
    %c0_63 = arith.constant 0 : index
    %c0_64 = arith.constant 0 : index
    %80 = vector.load %arg5[%c2_62, %c0_63, %c0_64] : memref<3x8x128xf32, #tpu.memory_space<vmem>>, vector<1x8x128xf32>
    %81 = vector.shape_cast %80 : vector<1x8x128xf32> to vector<8x128xf32>
    %82 = vector.shape_cast %76 : vector<16x128xf32> to vector<2x8x128xf32>
    %cst_65 = arith.constant dense<0.000000e+00> : vector<8x128xf32>
    %83 = vector.multi_reduction <add>, %82, %cst_65 [0] : vector<2x8x128xf32> to vector<8x128xf32>
    %84 = arith.addf %81, %83 : vector<8x128xf32>
    %c2_66 = arith.constant 2 : index
    %c0_67 = arith.constant 0 : index
    %c0_68 = arith.constant 0 : index
    %85 = vector.load %arg5[%c2_66, %c0_67, %c0_68] : memref<3x8x128xf32, #tpu.memory_space<vmem>>, vector<1x8x128xf32>
    %86 = vector.shape_cast %85 : vector<1x8x128xf32> to vector<8x128xf32>
    %87 = vector.shape_cast %84 : vector<8x128xf32> to vector<1x8x128xf32>
    tpu.vector_store %arg5[%c2_66, %c0_67, %c0_68], %87 {strides = array<i32>} : memref<3x8x128xf32, #tpu.memory_space<vmem>>, vector<1x8x128xf32>,
    %c2_69 = arith.constant 2 : index
    %c0_70 = arith.constant 0 : index
    %c0_71 = arith.constant 0 : index
    %88 = vector.load %arg6[%c2_69, %c0_70, %c0_71] : memref<3x8x128xf32, #tpu.memory_space<vmem>>, vector<1x8x128xf32>
    %89 = vector.shape_cast %88 : vector<1x8x128xf32> to vector<8x128xf32>
    %90 = vector.shape_cast %72 : vector<16x128xf32> to vector<2x8x128xf32>
    %cst_72 = arith.constant dense<0.000000e+00> : vector<8x128xf32>
    %91 = vector.multi_reduction <add>, %90, %cst_72 [0] : vector<2x8x128xf32> to vector<8x128xf32>
    %92 = arith.addf %89, %91 : vector<8x128xf32>
    %c2_73 = arith.constant 2 : index
    %c0_74 = arith.constant 0 : index
    %c0_75 = arith.constant 0 : index
    %93 = vector.load %arg6[%c2_73, %c0_74, %c0_75] : memref<3x8x128xf32, #tpu.memory_space<vmem>>, vector<1x8x128xf32>
    %94 = vector.shape_cast %93 : vector<1x8x128xf32> to vector<8x128xf32>
    %95 = vector.shape_cast %92 : vector<8x128xf32> to vector<1x8x128xf32>
    tpu.vector_store %arg6[%c2_73, %c0_74, %c0_75], %95 {strides = array<i32>} : memref<3x8x128xf32, #tpu.memory_space<vmem>>, vector<1x8x128xf32>,
    %c2_76 = arith.constant 2 : index
    %c0_77 = arith.constant 0 : index
    %c0_78 = arith.constant 0 : index
    %96 = vector.load %arg7[%c2_76, %c0_77, %c0_78] : memref<3x8x128xf32, #tpu.memory_space<vmem>>, vector<1x8x128xf32>
    %97 = vector.shape_cast %96 : vector<1x8x128xf32> to vector<8x128xf32>
    %98 = vector.shape_cast %79 : vector<16x128xf32> to vector<2x8x128xf32>
    %cst_79 = arith.constant dense<0.000000e+00> : vector<8x128xf32>
    %99 = vector.multi_reduction <add>, %98, %cst_79 [0] : vector<2x8x128xf32> to vector<8x128xf32>
    %100 = arith.addf %97, %99 : vector<8x128xf32>
    %c2_80 = arith.constant 2 : index
    %c0_81 = arith.constant 0 : index
    %c0_82 = arith.constant 0 : index
    %101 = vector.load %arg7[%c2_80, %c0_81, %c0_82] : memref<3x8x128xf32, #tpu.memory_space<vmem>>, vector<1x8x128xf32>
    %102 = vector.shape_cast %101 : vector<1x8x128xf32> to vector<8x128xf32>
    %103 = vector.shape_cast %100 : vector<8x128xf32> to vector<1x8x128xf32>
    tpu.vector_store %arg7[%c2_80, %c0_81, %c0_82], %103 {strides = array<i32>} : memref<3x8x128xf32, #tpu.memory_space<vmem>>, vector<1x8x128xf32>,
    %c0_i32_83 = arith.constant 0 : i32
    %104 = arith.cmpi eq, %arg1, %c0_i32_83 : i32
    %105 = arith.extui %104 : i1 to i32
    %c0_i32_84 = arith.constant 0 : i32
    %106 = arith.cmpi ne, %105, %c0_i32_84 : i32
    scf.if %106 {
      %c0_85 = arith.constant 0 : index
      %c0_86 = arith.constant 0 : index
      %c0_87 = arith.constant 0 : index
      %107 = vector.load %arg5[%c0_85, %c0_86, %c0_87] : memref<3x8x128xf32, #tpu.memory_space<vmem>>, vector<1x8x128xf32>
      %108 = vector.shape_cast %107 : vector<1x8x128xf32> to vector<8x128xf32>
      %109 = vector.shape_cast %108 : vector<8x128xf32> to vector<1x8x128xf32>
      %cst_88 = arith.constant dense<0.000000e+00> : vector<1xf32>
      %110 = vector.multi_reduction <add>, %109, %cst_88 [1, 2] : vector<1x8x128xf32> to vector<1xf32>
      %111 = vector.shape_cast %110 : vector<1xf32> to vector<1x1x1xf32>
      %112 = vector.extract %111[0, 0, 0] : f32 from vector<1x1x1xf32>
      %c0_89 = arith.constant 0 : index
      %c0_90 = arith.constant 0 : index
      %c0_91 = arith.constant 0 : index
      %113 = vector.load %arg6[%c0_89, %c0_90, %c0_91] : memref<3x8x128xf32, #tpu.memory_space<vmem>>, vector<1x8x128xf32>
      %114 = vector.shape_cast %113 : vector<1x8x128xf32> to vector<8x128xf32>
      %115 = vector.shape_cast %114 : vector<8x128xf32> to vector<1x8x128xf32>
      %cst_92 = arith.constant dense<0.000000e+00> : vector<1xf32>
      %116 = vector.multi_reduction <add>, %115, %cst_92 [1, 2] : vector<1x8x128xf32> to vector<1xf32>
      %117 = vector.shape_cast %116 : vector<1xf32> to vector<1x1x1xf32>
      %118 = vector.extract %117[0, 0, 0] : f32 from vector<1x1x1xf32>
      %c0_93 = arith.constant 0 : index
      %c0_94 = arith.constant 0 : index
      %c0_95 = arith.constant 0 : index
      %119 = vector.load %arg7[%c0_93, %c0_94, %c0_95] : memref<3x8x128xf32, #tpu.memory_space<vmem>>, vector<1x8x128xf32>
      %120 = vector.shape_cast %119 : vector<1x8x128xf32> to vector<8x128xf32>
      %121 = vector.shape_cast %120 : vector<8x128xf32> to vector<1x8x128xf32>
      %cst_96 = arith.constant dense<0.000000e+00> : vector<1xf32>
      %122 = vector.multi_reduction <add>, %121, %cst_96 [1, 2] : vector<1x8x128xf32> to vector<1xf32>
      %123 = vector.shape_cast %122 : vector<1xf32> to vector<1x1x1xf32>
      %124 = vector.extract %123[0, 0, 0] : f32 from vector<1x1x1xf32>
      %cst_97 = arith.constant 1.000000e+00 : f32
      %125 = arith.addf %112, %cst_97 : f32
      %cst_98 = arith.constant 8.000000e-01 : f32
      %126 = arith.mulf %cst_98, %124 : f32
      %cst_99 = arith.constant 2.000000e-01 : f32
      %127 = arith.mulf %cst_99, %118 : f32
      %128 = arith.addf %126, %127 : f32
      %cst_100 = arith.constant 1.000000e+00 : f32
      %129 = arith.addf %128, %cst_100 : f32
      %130 = arith.divf %125, %129 : f32
      %cst_101 = arith.constant 0.000000e+00 : f32
      %131 = arith.addf %cst_101, %130 : f32
      %c1_102 = arith.constant 1 : index
      %c0_103 = arith.constant 0 : index
      %c0_104 = arith.constant 0 : index
      %132 = vector.load %arg5[%c1_102, %c0_103, %c0_104] : memref<3x8x128xf32, #tpu.memory_space<vmem>>, vector<1x8x128xf32>
      %133 = vector.shape_cast %132 : vector<1x8x128xf32> to vector<8x128xf32>
      %134 = vector.shape_cast %133 : vector<8x128xf32> to vector<1x8x128xf32>
      %cst_105 = arith.constant dense<0.000000e+00> : vector<1xf32>
      %135 = vector.multi_reduction <add>, %134, %cst_105 [1, 2] : vector<1x8x128xf32> to vector<1xf32>
      %136 = vector.shape_cast %135 : vector<1xf32> to vector<1x1x1xf32>
      %137 = vector.extract %136[0, 0, 0] : f32 from vector<1x1x1xf32>
      %c1_106 = arith.constant 1 : index
      %c0_107 = arith.constant 0 : index
      %c0_108 = arith.constant 0 : index
      %138 = vector.load %arg6[%c1_106, %c0_107, %c0_108] : memref<3x8x128xf32, #tpu.memory_space<vmem>>, vector<1x8x128xf32>
      %139 = vector.shape_cast %138 : vector<1x8x128xf32> to vector<8x128xf32>
      %140 = vector.shape_cast %139 : vector<8x128xf32> to vector<1x8x128xf32>
      %cst_109 = arith.constant dense<0.000000e+00> : vector<1xf32>
      %141 = vector.multi_reduction <add>, %140, %cst_109 [1, 2] : vector<1x8x128xf32> to vector<1xf32>
      %142 = vector.shape_cast %141 : vector<1xf32> to vector<1x1x1xf32>
      %143 = vector.extract %142[0, 0, 0] : f32 from vector<1x1x1xf32>
      %c1_110 = arith.constant 1 : index
      %c0_111 = arith.constant 0 : index
      %c0_112 = arith.constant 0 : index
      %144 = vector.load %arg7[%c1_110, %c0_111, %c0_112] : memref<3x8x128xf32, #tpu.memory_space<vmem>>, vector<1x8x128xf32>
      %145 = vector.shape_cast %144 : vector<1x8x128xf32> to vector<8x128xf32>
      %146 = vector.shape_cast %145 : vector<8x128xf32> to vector<1x8x128xf32>
      %cst_113 = arith.constant dense<0.000000e+00> : vector<1xf32>
      %147 = vector.multi_reduction <add>, %146, %cst_113 [1, 2] : vector<1x8x128xf32> to vector<1xf32>
      %148 = vector.shape_cast %147 : vector<1xf32> to vector<1x1x1xf32>
      %149 = vector.extract %148[0, 0, 0] : f32 from vector<1x1x1xf32>
      %cst_114 = arith.constant 1.000000e+00 : f32
      %150 = arith.addf %137, %cst_114 : f32
      %cst_115 = arith.constant 8.000000e-01 : f32
      %151 = arith.mulf %cst_115, %149 : f32
      %cst_116 = arith.constant 2.000000e-01 : f32
      %152 = arith.mulf %cst_116, %143 : f32
      %153 = arith.addf %151, %152 : f32
      %cst_117 = arith.constant 1.000000e+00 : f32
      %154 = arith.addf %153, %cst_117 : f32
      %155 = arith.divf %150, %154 : f32
      %156 = arith.addf %131, %155 : f32
      %c2_118 = arith.constant 2 : index
      %c0_119 = arith.constant 0 : index
      %c0_120 = arith.constant 0 : index
      %157 = vector.load %arg5[%c2_118, %c0_119, %c0_120] : memref<3x8x128xf32, #tpu.memory_space<vmem>>, vector<1x8x128xf32>
      %158 = vector.shape_cast %157 : vector<1x8x128xf32> to vector<8x128xf32>
      %159 = vector.shape_cast %158 : vector<8x128xf32> to vector<1x8x128xf32>
      %cst_121 = arith.constant dense<0.000000e+00> : vector<1xf32>
      %160 = vector.multi_reduction <add>, %159, %cst_121 [1, 2] : vector<1x8x128xf32> to vector<1xf32>
      %161 = vector.shape_cast %160 : vector<1xf32> to vector<1x1x1xf32>
      %162 = vector.extract %161[0, 0, 0] : f32 from vector<1x1x1xf32>
      %c2_122 = arith.constant 2 : index
      %c0_123 = arith.constant 0 : index
      %c0_124 = arith.constant 0 : index
      %163 = vector.load %arg6[%c2_122, %c0_123, %c0_124] : memref<3x8x128xf32, #tpu.memory_space<vmem>>, vector<1x8x128xf32>
      %164 = vector.shape_cast %163 : vector<1x8x128xf32> to vector<8x128xf32>
      %165 = vector.shape_cast %164 : vector<8x128xf32> to vector<1x8x128xf32>
      %cst_125 = arith.constant dense<0.000000e+00> : vector<1xf32>
      %166 = vector.multi_reduction <add>, %165, %cst_125 [1, 2] : vector<1x8x128xf32> to vector<1xf32>
      %167 = vector.shape_cast %166 : vector<1xf32> to vector<1x1x1xf32>
      %168 = vector.extract %167[0, 0, 0] : f32 from vector<1x1x1xf32>
      %c2_126 = arith.constant 2 : index
      %c0_127 = arith.constant 0 : index
      %c0_128 = arith.constant 0 : index
      %169 = vector.load %arg7[%c2_126, %c0_127, %c0_128] : memref<3x8x128xf32, #tpu.memory_space<vmem>>, vector<1x8x128xf32>
      %170 = vector.shape_cast %169 : vector<1x8x128xf32> to vector<8x128xf32>
      %171 = vector.shape_cast %170 : vector<8x128xf32> to vector<1x8x128xf32>
      %cst_129 = arith.constant dense<0.000000e+00> : vector<1xf32>
      %172 = vector.multi_reduction <add>, %171, %cst_129 [1, 2] : vector<1x8x128xf32> to vector<1xf32>
      %173 = vector.shape_cast %172 : vector<1xf32> to vector<1x1x1xf32>
      %174 = vector.extract %173[0, 0, 0] : f32 from vector<1x1x1xf32>
      %cst_130 = arith.constant 1.000000e+00 : f32
      %175 = arith.addf %162, %cst_130 : f32
      %cst_131 = arith.constant 8.000000e-01 : f32
      %176 = arith.mulf %cst_131, %174 : f32
      %cst_132 = arith.constant 2.000000e-01 : f32
      %177 = arith.mulf %cst_132, %168 : f32
      %178 = arith.addf %176, %177 : f32
      %cst_133 = arith.constant 1.000000e+00 : f32
      %179 = arith.addf %178, %cst_133 : f32
      %180 = arith.divf %175, %179 : f32
      %181 = arith.addf %156, %180 : f32
      %182 = vector.broadcast %181 : f32 to vector<1x8x128xf32>
      %c0_134 = arith.constant 0 : index
      %c0_135 = arith.constant 0 : index
      %c0_136 = arith.constant 0 : index
      %183 = vector.load %arg4[%c0_134, %c0_135, %c0_136] : memref<1x8x128xf32, #tpu.memory_space<vmem>>, vector<1x8x128xf32>
      tpu.vector_store %arg4[%c0_134, %c0_135, %c0_136], %182 {strides = array<i32>} : memref<1x8x128xf32, #tpu.memory_space<vmem>>, vector<1x8x128xf32>,
    } else {
    }
    return
  }
  func.func @transform_0(%arg0: i32, %arg1: i32) -> (i32, i32, i32, i32) {
    %c0_i32 = arith.constant 0 : i32
    %c0_i32_0 = arith.constant 0 : i32
    %c0_i32_1 = arith.constant 0 : i32
    return %arg0, %c0_i32, %arg1, %c0_i32_0 : i32, i32, i32, i32
  }
  func.func @transform_1(%arg0: i32, %arg1: i32) -> (i32, i32, i32) {
    %c0_i32 = arith.constant 0 : i32
    %c0_i32_0 = arith.constant 0 : i32
    return %arg0, %arg1, %c0_i32 : i32, i32, i32
  }
  func.func @transform_2(%arg0: i32, %arg1: i32) -> (i32, i32, i32) {
    %c0_i32 = arith.constant 0 : i32
    %c0_i32_0 = arith.constant 0 : i32
    %c0_i32_1 = arith.constant 0 : i32
    return %arg0, %c0_i32, %c0_i32_0 : i32, i32, i32
  }
}

</mosaic_0001>

<llo_original>
// kernel: tpu_custom_call.1
$region0: #{tpu_custom_call.1}
  #allocation0 [shape = 'u32[]', space=smem, size = 0x4, offset = 0x4, fixed_abs, tag = 'smem constant byte address 0x4 - core index']
  #allocation1 [shape = 'u32[144,128]{1,0:T(1,128)}', space=vmem, size = 0x12000, scoped, tag = 'internal scratch']
  #allocation2 [shape = 'f32[3,8,128]{2,1,0:T(8,128)}', space=vmem, size = 0x3000, scoped, tag = 'scratch operand']
  #allocation3 [shape = 'f32[3,8,128]{2,1,0:T(8,128)}', space=vmem, size = 0x3000, scoped, tag = 'scratch operand']
  #allocation4 [shape = 'f32[3,8,128]{2,1,0:T(8,128)}', space=vmem, size = 0x3000, scoped, tag = 'scratch operand']
  %s0 = inlined_call_operand.hbm [shape: f32[2,4,16,128], index: 0, kind: input, shape index: {}]
  %s1 = inlined_call_operand.hbm [shape: s32[2,16,128], index: 1, kind: input, shape index: {}]
  %s2 = inlined_call_operand.hbm [shape: f32[2,8,128], index: 2, kind: output, shape index: {}]
  %s3 = sld [smem:[#allocation0]]
  $region57: #{tpu_custom_call.1} parent=0
    _
  %s5 = ssub.s32 1, %s3
  %s6 = scalar_select 0, %s5, %s3
  $region1: #{tpu_custom_call.1} parent=0
    #allocation5 [shape = 'u8[65536]{0}', space=vmem, size = 0x10000, scoped, tag = 'input window, operand 0']
    #allocation6 [shape = 's32[2]{0}', space=sflag, size = 0x8, scoped, tag = 'scoped memory for tpu_custom_call.1']
    #allocation7 [shape = 's32[2]{0}', space=sflag, size = 0x8, scoped, tag = 'scoped memory for tpu_custom_call.1']
    #allocation8 [shape = 'u8[16384]{0}', space=vmem, size = 0x4000, scoped, tag = 'input window, operand 1']
    #allocation9 [shape = 's32[2]{0}', space=sflag, size = 0x8, scoped, tag = 'scoped memory for tpu_custom_call.1']
    #allocation10 [shape = 'u8[8192]{0}', space=vmem, size = 0x2000, scoped, tag = 'output window, operand 0']
    %7 = vsyncpa [#allocation6], 0
    %s8 = scalar_lea.sflag [#allocation6], 1
    %9 = vsyncpa %s8, 0
    %10 = vsyncpa [#allocation9], 0
    %s11 = scalar_lea.sflag [#allocation9], 1
    %12 = vsyncpa %s11, 0
    %13 = vsyncpa [#allocation7], 0
    %s14 = scalar_lea.sflag [#allocation7], 1
    %15 = vsyncpa %s14, 0
    loop: start=0, step=1, limit=4
    $region2: #{tpu_custom_call.1} parent=1 // loop_pre_header
      _
    $region3: #{tpu_custom_call.1} parent=1 // loop_header
      %s17 = sphi 0, %s21
      %p18 = scmp.ge.s32.totalorder %s17, 4
      %s24 = sphi 0, %s36
      %s25 = sphi 0, %s32
      %s26 = sphi 0, %s24
      %s27 = sphi 0, %s25
      %s28 = sphi 0, %s26
      %s29 = sphi 0, %s27
      %s41 = sphi 0, %s43
      %s44 = sphi 0, %s41
      %s45 = sphi 0, %s44
      %s61 = sphi 0, %s45
      %s69 = sphi 0, %s71
      %s72 = sphi 0, %s69
      %s73 = sphi 0, %s72
      %s89 = sphi 0, %s73
      %s95 = sphi 0, %s97
      %s98 = sphi 0, %s95
      %s99 = sphi 0, %s98
      %s115 = sphi 0, %s99
    $region4: #{tpu_custom_call.1} parent=1 // loop_header_branch
      %20 = sbr.rel (%p18) target = $region8
    $region5: #{tpu_custom_call.1} parent=1 // loop_body
      %s22 = ssub.s32 %s17, 1
      %s23 = ssub.s32 %s17, 2
      %s30 = sadd.s32 1, %s25
      %p31 = scmp.ge.s32.totalorder %s30, 1
      %s32 = scalar_select %p31, 0, %s30
      %s33 = sadd.s32 1, %s24
      %s34 = scalar_select %p31, %s33, %s24
      %p35 = scmp.ge.s32.totalorder %s34, 2
      %s36 = scalar_select %p35, 0, %s34
      %s37 = ssub.s32 %s24, %s36
      %s38 = ssub.s32 %s25, %s32
      %s39 = sor.u32 %s37, %s38
      %p40 = scmp.eq.s32.totalorder %s39, 0
      %s42 = sadd.s32 %s41, 1
      %s43 = scalar_select %p40, %s41, %s42
      %p46 = pneg %p40
      %p47 = scmp.eq.s32.totalorder %s17, 1
      %p48 = por %p46, %p47
      %p49 = scmp.ne.s32.totalorder %s41, %s44
      %p50 = scmp.eq.s32.totalorder %s17, 0
      %p51 = por %p49, %p50
      %p52 = scmp.ne.s32.totalorder %s41, %s44
      %p53 = scmp.eq.s32.totalorder %s22, 1
      %p54 = por %p52, %p53
      %p55 = scmp.ne.s32.totalorder %s44, %s45
      %p56 = scmp.eq.s32.totalorder %s22, 0
      %p57 = por %p55, %p56
      %p58 = scmp.ne.s32.totalorder %s44, %s45
      %p59 = scmp.eq.s32.totalorder %s23, 1
      %p60 = por %p58, %p59
      %p62 = scmp.ne.s32.totalorder %s45, %s61
      %p63 = scmp.eq.s32.totalorder %s23, 0
      %p64 = por %p62, %p63
      %s65 = ssub.s32 %s24, %s36
      %s66 = ssub.s32 %s25, %s32
      %s67 = sor.u32 %s65, %s66
      %p68 = scmp.eq.s32.totalorder %s67, 0
      %s70 = sadd.s32 %s69, 1
      %s71 = scalar_select %p68, %s69, %s70
      %p74 = pneg %p68
      %p75 = scmp.eq.s32.totalorder %s17, 1
      %p76 = por %p74, %p75
      %p77 = scmp.ne.s32.totalorder %s69, %s72
      %p78 = scmp.eq.s32.totalorder %s17, 0
      %p79 = por %p77, %p78
      %p80 = scmp.ne.s32.totalorder %s69, %s72
      %p81 = scmp.eq.s32.totalorder %s22, 1
      %p82 = por %p80, %p81
      %p83 = scmp.ne.s32.totalorder %s72, %s73
      %p84 = scmp.eq.s32.totalorder %s22, 0
      %p85 = por %p83, %p84
      %p86 = scmp.ne.s32.totalorder %s72, %s73
      %p87 = scmp.eq.s32.totalorder %s23, 1
      %p88 = por %p86, %p87
      %p90 = scmp.ne.s32.totalorder %s73, %s89
      %p91 = scmp.eq.s32.totalorder %s23, 0
      %p92 = por %p90, %p91
      %s93 = ssub.s32 %s24, %s36
      %p94 = scmp.eq.s32.totalorder %s93, 0
      %s96 = sadd.s32 %s95, 1
      %s97 = scalar_select %p94, %s95, %s96
      %p100 = pneg %p94
      %p101 = scmp.eq.s32.totalorder %s17, 1
      %p102 = por %p100, %p101
      %p103 = scmp.ne.s32.totalorder %s95, %s98
      %p104 = scmp.eq.s32.totalorder %s17, 0
      %p105 = por %p103, %p104
      %p106 = scmp.ne.s32.totalorder %s95, %s98
      %p107 = scmp.eq.s32.totalorder %s22, 1
      %p108 = por %p106, %p107
      %p109 = scmp.ne.s32.totalorder %s98, %s99
      %p110 = scmp.eq.s32.totalorder %s22, 0
      %p111 = por %p109, %p110
      %p112 = scmp.ne.s32.totalorder %s98, %s99
      %p113 = scmp.eq.s32.totalorder %s23, 1
      %p114 = por %p112, %p113
      %p116 = scmp.ne.s32.totalorder %s99, %s115
      %p117 = scmp.eq.s32.totalorder %s23, 0
      %p118 = por %p116, %p117
      %p119 = scmp.le.s32.totalorder 1, %s17
      %p120 = scmp.lt.s32.totalorder %s17, 3
      %p121 = pnand %p119, %p120
      %p122 = pneg %p121
      // Predicated region
      $region9: #{tpu_custom_call.1} parent=5 // pred_check
        _
      $region10: #{tpu_custom_call.1} parent=5 // pred_check_branch
        %124 = sbr.rel (%p121) target = $region12
      $region11: #{tpu_custom_call.1} parent=5 // pred_region
        %s125 = ssub.s32 %s17, 1
      $region12: #{tpu_custom_call.1} parent=5 // pred_fallthru
        _
      %p126 = scmp.lt.s32.totalorder %s17, 2
      // Predicated region
      $region13: #{tpu_custom_call.1} parent=5 // pred_check
        %p127 = pneg %p126
      $region14: #{tpu_custom_call.1} parent=5 // pred_check_branch
        %129 = sbr.rel (%p127) target = $region16
      $region15: #{tpu_custom_call.1} parent=5 // pred_region
        // Predicated region
        $region17: #{tpu_custom_call.1} parent=15 // pred_check
          %p130 = pneg %p51
        $region18: #{tpu_custom_call.1} parent=15 // pred_check_branch
          %132 = sbr.rel (%p130) target = $region20
        $region19: #{tpu_custom_call.1} parent=15 // pred_region
          %s133 = sand.u32 %s41, 1
          %s134 = scalar_lea.sflag [#allocation6], %s133
          %s135 = sand.u32 %s41, 1
          %s136 = smul.addr %s135, 64
          %s137 = scalar_lea.vmem [#allocation5], %s136
          %s138 = smul.u32 2, %s25
          %s140 = ssub.s32 1024, 1024
          %141 = vsyncadd %s134, %s140
          %s142 = smul.addr %s24, 8
          %s143 = sadd.s32 %s138, %s142
          %s144 = smul.addr %s143, 128
          %s145 = scalar_lea.hbm %s0, %s144
          %s146 = sshll.u32 %s137, 4
          %s147 = int_to_ptr.vmem [resolvable:$true] %s146
          %152 = dma.hbm_to_vmem [thread:$0]  %s145, 1024, %s147, %s134, 128, 128, 8
        $region20: #{tpu_custom_call.1} parent=15 // pred_fallthru
          _
        // Predicated region
        $region21: #{tpu_custom_call.1} parent=15 // pred_check
          %p153 = pneg %p79
        $region22: #{tpu_custom_call.1} parent=15 // pred_check_branch
          %155 = sbr.rel (%p153) target = $region24
        $region23: #{tpu_custom_call.1} parent=15 // pred_region
          %s156 = sand.u32 %s69, 1
          %s157 = scalar_lea.sflag [#allocation9], %s156
          %s158 = sand.u32 %s69, 1
          %s159 = smul.addr %s158, 16
          %s160 = scalar_lea.vmem [#allocation8], %s159
          %s161 = smul.u32 2, %s25
          %s163 = ssub.s32 256, 256
          %164 = vsyncadd %s157, %s163
          %s165 = smul.addr %s24, 2
          %s166 = sadd.s32 %s161, %s165
          %s167 = smul.addr %s166, 128
          %s168 = scalar_lea.hbm %s1, %s167
          %s169 = sshll.u32 %s160, 4
          %s170 = int_to_ptr.vmem [resolvable:$true] %s169
          %175 = dma.hbm_to_vmem [thread:$0]  %s168, 256, %s170, %s157, 128, 128, 8
        $region24: #{tpu_custom_call.1} parent=15 // pred_fallthru
          _
      $region16: #{tpu_custom_call.1} parent=5 // pred_fallthru
        _
      %p176 = scmp.le.s32.totalorder 1, %s17
      %p177 = scmp.lt.s32.totalorder %s17, 3
      %p178 = pnand %p176, %p177
      %p179 = pneg %p178
      // Predicated region
      $region25: #{tpu_custom_call.1} parent=5 // pred_check
        _
      $region26: #{tpu_custom_call.1} parent=5 // pred_check_branch
        %181 = sbr.rel (%p178) target = $region28
      $region27: #{tpu_custom_call.1} parent=5 // pred_region
        %s182 = ssub.s32 %s17, 1
        %s183 = sand.u32 %s44, 1
        %s184 = scalar_lea.sflag [#allocation6], %s183
        %s185 = sand.u32 %s44, 1
        %s186 = smul.addr %s185, 64
        %s187 = scalar_lea.vmem [#allocation5], %s186
        // Predicated region
        $region29: #{tpu_custom_call.1} parent=27 // pred_check
          %p188 = pneg %p57
        $region30: #{tpu_custom_call.1} parent=27 // pred_check_branch
          %190 = sbr.rel (%p188) target = $region32
        $region31: #{tpu_custom_call.1} parent=27 // pred_region
          %191 = dma.done %s184, 1024
        $region32: #{tpu_custom_call.1} parent=27 // pred_fallthru
          _
        %s192 = sand.u32 %s72, 1
        %s193 = scalar_lea.sflag [#allocation9], %s192
        %s194 = sand.u32 %s72, 1
        %s195 = smul.addr %s194, 16
        %s196 = scalar_lea.vmem [#allocation8], %s195
        // Predicated region
        $region33: #{tpu_custom_call.1} parent=27 // pred_check
          %p197 = pneg %p85
        $region34: #{tpu_custom_call.1} parent=27 // pred_check_branch
          %199 = sbr.rel (%p197) target = $region36
        $region35: #{tpu_custom_call.1} parent=27 // pred_region
          %200 = dma.done %s193, 256
        $region36: #{tpu_custom_call.1} parent=27 // pred_fallthru
          _
        %s201 = sand.u32 %s44, 1
        %s202 = scalar_lea.sflag [#allocation6], %s201
        %s203 = sand.u32 %s44, 1
        %s204 = smul.addr %s203, 64
        %s205 = scalar_lea.vmem [#allocation5], %s204
        %p206 = pneg %p57
        %p207 = pneg %p54
        %s208 = sand.u32 %s72, 1
        %s209 = scalar_lea.sflag [#allocation9], %s208
        %s210 = sand.u32 %s72, 1
        %s211 = smul.addr %s210, 16
        %s212 = scalar_lea.vmem [#allocation8], %s211
        %p213 = pneg %p85
        %p214 = pneg %p82
        %p215 = pneg %p111
        %p216 = pneg %p108
        %s217 = sand.u32 %s98, 1
        %s218 = scalar_lea.sflag [#allocation7], %s217
        %s219 = sand.u32 %s98, 1
        %s220 = smul.addr %s219, 8
        %s221 = scalar_lea.vmem [#allocation10], %s220
        %s222 = smul.u32 2, %s27
        %s223 = smul.u32 2, %s27
        %p224 = scmp.eq.s32.totalorder %s27, 0
        // Predicated region
        $region37: #{tpu_custom_call.1} parent=27 // pred_check
          %p225 = pneg %p224
        $region38: #{tpu_custom_call.1} parent=27 // pred_check_branch
          %227 = sbr.rel (%p225) target = $region40
        $region39: #{tpu_custom_call.1} parent=27 // pred_region
          %228 = vst [vmem:[#allocation2] sm:$0xff] 0.0
          %229 = vst [vmem:[#allocation2 + $0x8] sm:$0xff] 0.0
          %230 = vst [vmem:[#allocation2 + $0x10] sm:$0xff] 0.0
          %231 = vst [vmem:[#allocation3] sm:$0xff] 0.0
          %232 = vst [vmem:[#allocation3 + $0x8] sm:$0xff] 0.0
          %233 = vst [vmem:[#allocation3 + $0x10] sm:$0xff] 0.0
          %234 = vst [vmem:[#allocation4] sm:$0xff] 0.0
          %235 = vst [vmem:[#allocation4 + $0x8] sm:$0xff] 0.0
          %236 = vst [vmem:[#allocation4 + $0x10] sm:$0xff] 0.0
        $region40: #{tpu_custom_call.1} parent=27 // pred_fallthru
          _
        %v237 = vld [vmem:[%s196] sm:$0xff]
        %v238 = vld [vmem:[%s196 + $0x8] sm:$0xff]
        %s239 = scalar_lea.vmem %s187, 16 [#allocation5]
        %v240 = vld [vmem:[%s239] sm:$0xff]
        %v241 = vld [vmem:[%s239 + $0x8] sm:$0xff]
        %vm242 = vcmp.eq.s32.totalorder %v237, 1
        %vm243 = vcmp.eq.s32.totalorder %v238, 1
        %v244 = vsel %vm242, %v240, 0.0
        %v245 = vsel %vm243, %v241, 0.0
        %v246 = vsel %vm242, 1.0, 0.0
        %v247 = vsel %vm243, 1.0, 0.0
        %v248 = vld [vmem:[#allocation2] sm:$0xff]
        %v249 = vadd.f32 %v244, %v245
        %v250 = vadd.f32 %v248, %v249
        %251 = vst [vmem:[#allocation2] sm:$0xff] %v250
        %v252 = vld [vmem:[#allocation3] sm:$0xff]
        %v253 = vadd.f32 %v240, %v241
        %v254 = vadd.f32 %v252, %v253
        %255 = vst [vmem:[#allocation3] sm:$0xff] %v254
        %v256 = vld [vmem:[#allocation4] sm:$0xff]
        %v257 = vadd.f32 %v246, %v247
        %v258 = vadd.f32 %v256, %v257
        %259 = vst [vmem:[#allocation4] sm:$0xff] %v258
        %s260 = scalar_lea.vmem %s187, 32 [#allocation5]
        %v261 = vld [vmem:[%s260] sm:$0xff]
        %v262 = vld [vmem:[%s260 + $0x8] sm:$0xff]
        %vm263 = vcmp.eq.s32.totalorder %v237, 2
        %vm264 = vcmp.eq.s32.totalorder %v238, 2
        %v265 = vsel %vm263, %v261, 0.0
        %v266 = vsel %vm264, %v262, 0.0
        %v267 = vsel %vm263, 1.0, 0.0
        %v268 = vsel %vm264, 1.0, 0.0
        %s269 = scalar_lea.vmem [#allocation2], 8
        %v270 = vld [vmem:[%s269] sm:$0xff]
        %v271 = vadd.f32 %v265, %v266
        %v272 = vadd.f32 %v270, %v271
        %273 = vst [vmem:[%s269] sm:$0xff] %v272
        %s274 = scalar_lea.vmem [#allocation3], 8
        %v275 = vld [vmem:[%s274] sm:$0xff]
        %v276 = vadd.f32 %v261, %v262
        %v277 = vadd.f32 %v275, %v276
        %278 = vst [vmem:[%s274] sm:$0xff] %v277
        %s279 = scalar_lea.vmem [#allocation4], 8
        %v280 = vld [vmem:[%s279] sm:$0xff]
        %v281 = vadd.f32 %v267, %v268
        %v282 = vadd.f32 %v280, %v281
        %283 = vst [vmem:[%s279] sm:$0xff] %v282
        %s284 = scalar_lea.vmem %s187, 48 [#allocation5]
        %v285 = vld [vmem:[%s284] sm:$0xff]
        %v286 = vld [vmem:[%s284 + $0x8] sm:$0xff]
        %vm287 = vcmp.eq.s32.totalorder %v237, 3
        %vm288 = vcmp.eq.s32.totalorder %v238, 3
        %v289 = vsel %vm287, %v285, 0.0
        %v290 = vsel %vm288, %v286, 0.0
        %v291 = vsel %vm287, 1.0, 0.0
        %v292 = vsel %vm288, 1.0, 0.0
        %s293 = scalar_lea.vmem [#allocation2], 16
        %v294 = vld [vmem:[%s293] sm:$0xff]
        %v295 = vadd.f32 %v289, %v290
        %v296 = vadd.f32 %v294, %v295
        %297 = vst [vmem:[%s293] sm:$0xff] %v296
        %s298 = scalar_lea.vmem [#allocation3], 16
        %v299 = vld [vmem:[%s298] sm:$0xff]
        %v300 = vadd.f32 %v285, %v286
        %v301 = vadd.f32 %v299, %v300
        %302 = vst [vmem:[%s298] sm:$0xff] %v301
        %s303 = scalar_lea.vmem [#allocation4], 16
        %v304 = vld [vmem:[%s303] sm:$0xff]
        %v305 = vadd.f32 %v291, %v292
        %v306 = vadd.f32 %v304, %v305
        %307 = vst [vmem:[%s303] sm:$0xff] %v306
        // Predicated region
        $region41: #{tpu_custom_call.1} parent=27 // pred_check
          %p308 = pneg %p224
        $region42: #{tpu_custom_call.1} parent=27 // pred_check_branch
          %310 = sbr.rel (%p308) target = $region44
        $region43: #{tpu_custom_call.1} parent=27 // pred_region
          %v311 = vld [vmem:[#allocation2] sm:$0xff]
          %312 = vadd.xlane.f32.xlu0 %v311
          %v313 = vpop.xlane.xlu0 %312
          %v314 = vrot.slane %v313, 4
          %v315 = vadd.f32 %v313, %v314
          %v316 = vrot.slane %v315, 2
          %v317 = vadd.f32 %v315, %v316
          %v318 = vrot.slane %v317, 1
          %v319 = vadd.f32 %v317, %v318
          %s320 = vtos %v319
          %v321 = vld [vmem:[#allocation3] sm:$0xff]
          %322 = vadd.xlane.f32.xlu0 %v321
          %v323 = vpop.xlane.xlu0 %322
          %v324 = vrot.slane %v323, 4
          %v325 = vadd.f32 %v323, %v324
          %v326 = vrot.slane %v325, 2
          %v327 = vadd.f32 %v325, %v326
          %v328 = vrot.slane %v327, 1
          %v329 = vadd.f32 %v327, %v328
          %s330 = vtos %v329
          %v331 = vld [vmem:[#allocation4] sm:$0xff]
          %332 = vadd.xlane.f32.xlu0 %v331
          %v333 = vpop.xlane.xlu0 %332
          %v334 = vrot.slane %v333, 4
          %v335 = vadd.f32 %v333, %v334
          %v336 = vrot.slane %v335, 2
          %v337 = vadd.f32 %v335, %v336
          %v338 = vrot.slane %v337, 1
          %v339 = vadd.f32 %v337, %v338
          %s340 = vtos %v339
          %s341 = sadd.f32 %s320, 1.0
          %s342 = smul.f32 %s340, 0.8
          %s343 = smul.f32 %s330, 0.2
          %s344 = sadd.f32 %s342, %s343
          %s345 = sadd.f32 %s344, 1.0
          %v346 = vstv %s345
          %v347 = vrcp.pop %v346
          %s348 = vtos %v347
          %s349 = smul.f32 %s341, %s348
          %s350 = sadd.f32 %s349, 0.0
          %v351 = vld [vmem:[%s269] sm:$0xff]
          %352 = vadd.xlane.f32.xlu0 %v351
          %v353 = vpop.xlane.xlu0 %352
          %v354 = vrot.slane %v353, 4
          %v355 = vadd.f32 %v353, %v354
          %v356 = vrot.slane %v355, 2
          %v357 = vadd.f32 %v355, %v356
          %v358 = vrot.slane %v357, 1
          %v359 = vadd.f32 %v357, %v358
          %s360 = vtos %v359
          %v361 = vld [vmem:[%s274] sm:$0xff]
          %362 = vadd.xlane.f32.xlu0 %v361
          %v363 = vpop.xlane.xlu0 %362
          %v364 = vrot.slane %v363, 4
          %v365 = vadd.f32 %v363, %v364
          %v366 = vrot.slane %v365, 2
          %v367 = vadd.f32 %v365, %v366
          %v368 = vrot.slane %v367, 1
          %v369 = vadd.f32 %v367, %v368
          %s370 = vtos %v369
          %v371 = vld [vmem:[%s279] sm:$0xff]
          %372 = vadd.xlane.f32.xlu0 %v371
          %v373 = vpop.xlane.xlu0 %372
          %v374 = vrot.slane %v373, 4
          %v375 = vadd.f32 %v373, %v374
          %v376 = vrot.slane %v375, 2
          %v377 = vadd.f32 %v375, %v376
          %v378 = vrot.slane %v377, 1
          %v379 = vadd.f32 %v377, %v378
          %s380 = vtos %v379
          %s381 = sadd.f32 %s360, 1.0
          %s382 = smul.f32 %s380, 0.8
          %s383 = smul.f32 %s370, 0.2
          %s384 = sadd.f32 %s382, %s383
          %s385 = sadd.f32 %s384, 1.0
          %v386 = vstv %s385
          %v387 = vrcp.pop %v386
          %s388 = vtos %v387
          %s389 = smul.f32 %s381, %s388
          %s390 = sadd.f32 %s350, %s389
          %v391 = vld [vmem:[%s293] sm:$0xff]
          %392 = vadd.xlane.f32.xlu0 %v391
          %v393 = vpop.xlane.xlu0 %392
          %v394 = vrot.slane %v393, 4
          %v395 = vadd.f32 %v393, %v394
          %v396 = vrot.slane %v395, 2
          %v397 = vadd.f32 %v395, %v396
          %v398 = vrot.slane %v397, 1
          %v399 = vadd.f32 %v397, %v398
          %s400 = vtos %v399
          %v401 = vld [vmem:[%s298] sm:$0xff]
          %402 = vadd.xlane.f32.xlu0 %v401
          %v403 = vpop.xlane.xlu0 %402
          %v404 = vrot.slane %v403, 4
          %v405 = vadd.f32 %v403, %v404
          %v406 = vrot.slane %v405, 2
          %v407 = vadd.f32 %v405, %v406
          %v408 = vrot.slane %v407, 1
          %v409 = vadd.f32 %v407, %v408
          %s410 = vtos %v409
          %v411 = vld [vmem:[%s303] sm:$0xff]
          %412 = vadd.xlane.f32.xlu0 %v411
          %v413 = vpop.xlane.xlu0 %412
          %v414 = vrot.slane %v413, 4
          %v415 = vadd.f32 %v413, %v414
          %v416 = vrot.slane %v415, 2
          %v417 = vadd.f32 %v415, %v416
          %v418 = vrot.slane %v417, 1
          %v419 = vadd.f32 %v417, %v418
          %s420 = vtos %v419
          %s421 = sadd.f32 %s400, 1.0
          %s422 = smul.f32 %s420, 0.8
          %s423 = smul.f32 %s410, 0.2
          %s424 = sadd.f32 %s422, %s423
          %s425 = sadd.f32 %s424, 1.0
          %v426 = vstv %s425
          %v427 = vrcp.pop %v426
          %s428 = vtos %v427
          %s429 = smul.f32 %s421, %s428
          %s430 = sadd.f32 %s390, %s429
          %v431 = vstv %s430
          %432 = vst [vmem:[%s221] sm:$0xff] %v431
        $region44: #{tpu_custom_call.1} parent=27 // pred_fallthru
          _
        %s433 = sand.u32 %s98, 1
        %s434 = scalar_lea.sflag [#allocation7], %s433
        %s435 = sand.u32 %s98, 1
        %s436 = smul.addr %s435, 8
        %s437 = scalar_lea.vmem [#allocation10], %s436
        // Predicated region
        $region45: #{tpu_custom_call.1} parent=27 // pred_check
          %p438 = pneg %p108
        $region46: #{tpu_custom_call.1} parent=27 // pred_check_branch
          %440 = sbr.rel (%p438) target = $region48
        $region47: #{tpu_custom_call.1} parent=27 // pred_region
          %s442 = ssub.s32 128, 128
          %443 = vsyncadd %s434, %s442
          %s444 = smul.addr %s26, 128
          %s445 = scalar_lea.hbm %s2, %s444
          %s447 = sshll.u32 %s437, 4
          %s448 = int_to_ptr.vmem [resolvable:$true] %s447
          %450 = dma.vmem_to_hbm [thread:$0]  %s448, 128, %s445, %s434
        $region48: #{tpu_custom_call.1} parent=27 // pred_fallthru
          _
      $region28: #{tpu_custom_call.1} parent=5 // pred_fallthru
        _
      %p451 = scmp.le.s32.totalorder 2, %s17
      // Predicated region
      $region49: #{tpu_custom_call.1} parent=5 // pred_check
        %p452 = pneg %p451
      $region50: #{tpu_custom_call.1} parent=5 // pred_check_branch
        %454 = sbr.rel (%p452) target = $region52
      $region51: #{tpu_custom_call.1} parent=5 // pred_region
        %s455 = ssub.s32 %s17, 2
        // Predicated region
        $region53: #{tpu_custom_call.1} parent=51 // pred_check
          %p456 = pneg %p114
        $region54: #{tpu_custom_call.1} parent=51 // pred_check_branch
          %458 = sbr.rel (%p456) target = $region56
        $region55: #{tpu_custom_call.1} parent=51 // pred_region
          %s459 = sand.u32 %s99, 1
          %s460 = scalar_lea.sflag [#allocation7], %s459
          %s461 = sand.u32 %s99, 1
          %s462 = smul.addr %s461, 8
          %s463 = scalar_lea.vmem [#allocation10], %s462
          %464 = dma.done %s460, 128
        $region56: #{tpu_custom_call.1} parent=51 // pred_fallthru
          _
      $region52: #{tpu_custom_call.1} parent=5 // pred_fallthru
        _
    $region6: #{tpu_custom_call.1} parent=1 // loop_footer
      %s21 = sadd.s32 1, %s17
    $region7: #{tpu_custom_call.1} parent=1 // loop_footer_branch
      %16 = sbr.rel target = $region3
    $region8: #{tpu_custom_call.1} parent=1 // loop_exit
      _
    %465 = vsyncpa [#allocation6], 1
    %s466 = scalar_lea.sflag [#allocation6], 1
    %467 = vsyncpa %s466, 1
    %468 = vsyncpa [#allocation9], 1
    %s469 = scalar_lea.sflag [#allocation9], 1
    %470 = vsyncpa %s469, 1
    %471 = vsyncpa [#allocation7], 1
    %s472 = scalar_lea.sflag [#allocation7], 1
    %473 = vsyncpa %s472, 1

</llo_original>
